<compile_context>
chip_gen: v7x
topology: tpu7x:2x2x1
jax: 0.10.0
libtpu: 0.0.40
codegen_flags: <defaults>
</compile_context>

<pallas_src>
import jax
import jax.numpy as jnp
from jax.experimental import pallas as pl
from jax.experimental.pallas import tpu as pltpu

_MIB = 1024 * 1024


def _make_mish_kernel(compute_dtype):
    use_f32 = jnp.dtype(compute_dtype) == jnp.dtype(jnp.float32)

    def kernel(x_ref, o_ref):
        x = x_ref[...].astype(compute_dtype)
        # PyTorch F.softplus default: beta=1, threshold=20 -> softplus(x) = x
        # for x > 20 (and tanh(x) == 1.0 there, so mish(x) == x).
        # For x <= 20: tanh(log1p(e)) == w / (w + 2) with e = exp(x), w = e*(e+2).
        e = jnp.exp(jnp.minimum(x, 20.0))
        w = e * (e + 2.0)
        if use_f32:
            # exact recip: 1 EUP push + cheap VPU refine
            t = w * pl.reciprocal(w + 2.0, approx=False)
        else:
            # bf16 path: keep everything packed 2x per vreg
            t = w / (w + 2.0)
        o_ref[...] = jnp.where(x > 20.0, x, x * t).astype(o_ref.dtype)

    return kernel


def _ceil_to(a: int, m: int) -> int:
    return -(-a // m) * m


def _sublane_multiple(dtype) -> int:
    return {4: 8, 2: 16, 1: 32}.get(jnp.dtype(dtype).itemsize, 8)


def _vmem_capacity_bytes() -> int:
    try:
        info = pltpu.get_tpu_info()
        for attr in ("vmem_capacity_bytes", "vmem_bytes", "vmem_size_bytes"):
            v = getattr(info, attr, None)
            if v:
                return int(v)
    except Exception:
        pass
    return 64 * _MIB  # conservative fallback: v7x per-TensorCore VMEM


def _block_and_vmem_budget():
    """Pick (target_block_bytes, vmem_limit_bytes) for this TPU generation."""
    cap = _vmem_capacity_bytes()
    # Spend at most ~70% of physical VMEM and never more than 48 MiB (safe
    # ceiling for v7x's 64 MiB); leave ~8 MiB headroom for internal scratch.
    budget = min(48 * _MIB, (cap * 7) // 10)
    # Double-buffered input + output => 4 block-sized VMEM buffers.
    target_block_bytes = min(8 * _MIB, max(_MIB, (budget - 8 * _MIB) // 4))
    vmem_limit = 4 * target_block_bytes + 8 * _MIB
    return target_block_bytes, vmem_limit


def mish(x: jax.Array, *, donate: bool = False) -> jax.Array:
    """Elementwise Mish. Accepts any shape (e.g. NCHW); returns same shape/dtype."""
    orig_shape = x.shape
    orig_dtype = x.dtype
    n = x.size
    if n == 0:
        return x

    itemsize = jnp.dtype(orig_dtype).itemsize
    sub = _sublane_multiple(orig_dtype)
    compute_dtype = (jnp.bfloat16
                     if jnp.dtype(orig_dtype) == jnp.dtype(jnp.bfloat16)
                     else jnp.float32)
    target_block_bytes, vmem_limit = _block_and_vmem_budget()

    # Widest lane count (multiple of 128) that divides n: zero-copy reshape,
    # no padding, no output slice.
    lanes = next((c for c in (512, 256, 128) if n % c == 0), 0)

    x_flat = x.reshape(-1)
    padded = False
    if lanes:
        rows = n // lanes
        x2d = x_flat.reshape(rows, lanes)
    else:
        # TODO(synk): lane-ragged inputs (n % 128 != 0) still pay a pad + slice
        # HBM round trip; an in-kernel masked tail store (scalar-prefetched n)
        # would remove it. Rare for conv/transformer activation shapes.
        lanes = 128
        rows = -(-n // lanes)
        x2d = jnp.pad(x_flat, (0, rows * lanes - n)).reshape(rows, lanes)
        padded = True

    # Block rows: ~target_block_bytes per block, a multiple of the dtype's
    # sublane packing, and no larger than needed for the whole array.
    target_tr = max(sub, (target_block_bytes // (lanes * itemsize)) // sub * sub)
    tr = min(target_tr, _ceil_to(rows, sub))
    num_blocks = -(-rows // tr)  # last block may be partial: Pallas masks it.

    out2d = pl.pallas_call(
        _make_mish_kernel(compute_dtype),
        out_shape=jax.ShapeDtypeStruct((rows, lanes), orig_dtype),
        grid_spec=pltpu.PrefetchScalarGridSpec(
            num_scalar_prefetch=0,
            grid=(num_blocks,),
            in_specs=[pl.BlockSpec((tr, lanes), lambda i: (i, 0))],
            out_specs=pl.BlockSpec((tr, lanes), lambda i: (i, 0)),
        ),
        compiler_params=pltpu.CompilerParams(
            # TODO(synk): on v7x try pltpu.CORE_PARALLEL (2 TensorCores) after
            # profiling; "parallel" is the portable choice across v5e/v6e/v7x.
            dimension_semantics=("parallel",),
            vmem_limit_bytes=vmem_limit,
        ),
        input_output_aliases=({0: 0} if donate else {}),
    )(x2d)

    if padded:
        return out2d.reshape(-1)[:n].reshape(orig_shape)
    return out2d.reshape(orig_shape)  # contiguous reshape only, no copy


def _mish_ref(x):
    xf = x.astype(jnp.float32)
    sp = jnp.where(xf > 20.0, xf, jnp.log1p(jnp.exp(jnp.minimum(xf, 20.0))))
    return (xf * jnp.tanh(sp)).astype(x.dtype)


if __name__ == "__main__":
    key = jax.random.PRNGKey(0)

    # Primary check: NCHW f32 like the PyTorch module, scaled so some values
    # cross the softplus threshold (|x| up to ~30).
    x = jax.random.normal(key, (2, 4, 16, 16), dtype=jnp.float32) * 8.0
    y = jax.block_until_ready(mish(x))
    y_ref = _mish_ref(x)
    assert y.shape == x.shape and y.dtype == x.dtype
    assert jnp.allclose(y, y_ref, atol=1e-5, rtol=1e-5), "f32 mismatch vs reference"

    # Lane-ragged size (exercises the pad/slice fallback path).
    x2 = jax.random.normal(jax.random.PRNGKey(1), (1, 3, 7, 5), dtype=jnp.float32)
    y2 = jax.block_until_ready(mish(x2))
    assert jnp.allclose(y2, _mish_ref(x2), atol=1e-5, rtol=1e-5), "ragged mismatch"

    # bf16 path (sublane=16 rounding + bf16 internal compute).
    x3 = jax.random.normal(jax.random.PRNGKey(2), (2, 4, 16, 16), dtype=jnp.bfloat16)
    y3 = jax.block_until_ready(mish(x3))
    assert y3.shape == x3.shape and y3.dtype == jnp.bfloat16
    assert jnp.allclose(y3.astype(jnp.float32), _mish_ref(x3).astype(jnp.float32),
                        atol=2e-2, rtol=2e-2), "bf16 mismatch"

    # Donated-buffer path (input_output_aliases={0: 0} under jit donation).
    x4 = jax.random.normal(jax.random.PRNGKey(3), (2, 4, 16, 16),
                           dtype=jnp.float32) * 8.0
    y4_ref = _mish_ref(x4)
    mish_donating = jax.jit(lambda a: mish(a, donate=True), donate_argnums=0)
    y4 = jax.block_until_ready(mish_donating(x4))
    assert jnp.allclose(y4, y4_ref, atol=1e-5, rtol=1e-5), "donate mismatch"

    print("KERNEL_OK")
</pallas_src>

<mosaic_0001>
module attributes {stable_mosaic.version = 11 : i64} {
  func.func @kernel(%arg0: i32, %arg1: memref<8x512xf32, #tpu.memory_space<vmem>>, %arg2: memref<8x512xf32, #tpu.memory_space<vmem>>) attributes {dimension_semantics = [#tpu.dimension_semantics<parallel>], iteration_bounds = array<i64: 1>, scalar_prefetch = 0 : i64, scratch_operands = 0 : i64, tpu.core_type = #tpu.core_type<tc>, window_params = [{transform_indices = @transform_0, window_bounds = array<i64: 8, 512>}, {transform_indices = @transform_1, window_bounds = array<i64: 8, 512>}]} {
    %c0 = arith.constant 0 : index
    %c0_0 = arith.constant 0 : index
    %0 = vector.load %arg1[%c0, %c0_0] : memref<8x512xf32, #tpu.memory_space<vmem>>, vector<8x512xf32>
    %cst = arith.constant 2.000000e+01 : f32
    %1 = vector.broadcast %cst : f32 to vector<8x512xf32>
    %2 = arith.minimumf %0, %1 : vector<8x512xf32>
    %3 = math.exp %2 : vector<8x512xf32>
    %cst_1 = arith.constant 2.000000e+00 : f32
    %4 = vector.broadcast %cst_1 : f32 to vector<8x512xf32>
    %5 = arith.addf %3, %4 : vector<8x512xf32>
    %6 = arith.mulf %3, %5 : vector<8x512xf32>
    %cst_2 = arith.constant 2.000000e+00 : f32
    %7 = vector.broadcast %cst_2 : f32 to vector<8x512xf32>
    %8 = arith.addf %6, %7 : vector<8x512xf32>
    %9 = tpu.reciprocal %8 : vector<8x512xf32> -> vector<8x512xf32>
    %10 = arith.mulf %6, %9 : vector<8x512xf32>
    %cst_3 = arith.constant 2.000000e+01 : f32
    %11 = vector.broadcast %cst_3 : f32 to vector<8x512xf32>
    %12 = arith.cmpf ogt, %0, %11 : vector<8x512xf32>
    %13 = arith.mulf %0, %10 : vector<8x512xf32>
    %14 = arith.select %12, %0, %13 : vector<8x512xi1>, vector<8x512xf32>
    %c0_4 = arith.constant 0 : index
    %c0_5 = arith.constant 0 : index
    %15 = vector.load %arg2[%c0_4, %c0_5] : memref<8x512xf32, #tpu.memory_space<vmem>>, vector<8x512xf32>
    tpu.vector_store %arg2[%c0_4, %c0_5], %14 {strides = array<i32>} : memref<8x512xf32, #tpu.memory_space<vmem>>, vector<8x512xf32>,
    return
  }
  func.func @transform_0(%arg0: i32) -> (i32, i32) {
    %c0_i32 = arith.constant 0 : i32
    %c0_i32_0 = arith.constant 0 : i32
    return %arg0, %c0_i32 : i32, i32
  }
  func.func @transform_1(%arg0: i32) -> (i32, i32) {
    %c0_i32 = arith.constant 0 : i32
    %c0_i32_0 = arith.constant 0 : i32
    return %arg0, %c0_i32 : i32, i32
  }
}

</mosaic_0001>

<llo_original>
// kernel: tpu_custom_call.1
$region0: #{tpu_custom_call.1}
  #allocation0 [shape = 'u32[]', space=smem, size = 0x4, offset = 0x4, fixed_abs, tag = 'smem constant byte address 0x4 - core index']
  #allocation1 [shape = 'u32[144,128]{1,0:T(1,128)}', space=vmem, size = 0x12000, scoped, tag = 'internal scratch']
  %s0 = inlined_call_operand.hbm [shape: f32[4,512], index: 0, kind: input, shape index: {}]
  %s1 = inlined_call_operand.hbm [shape: f32[4,512], index: 1, kind: output, shape index: {}]
  %s2 = sld [smem:[#allocation0]]
  $region18: #{tpu_custom_call.1} parent=0
    _
  %s4 = ssub.s32 1, %s2
  %s5 = scalar_select 0, %s4, %s2
  $region1: #{tpu_custom_call.1} parent=0
    #allocation2 [shape = 'u8[16384]{0}', space=vmem, size = 0x4000, scoped, tag = 'input window, operand 0, single buffered']
    #allocation3 [shape = 's32[1]{0}', space=sflag, size = 0x4, scoped, tag = 'scoped memory for tpu_custom_call.1']
    #allocation4 [shape = 's32[1]{0}', space=sflag, size = 0x4, scoped, tag = 'scoped memory for tpu_custom_call.1']
    #allocation5 [shape = 'u8[16384]{0}', space=vmem, size = 0x4000, scoped, tag = 'output window, operand 0, single buffered']
    %6 = vsyncpa [#allocation3], 0
    %7 = vsyncpa [#allocation4], 0
    // Predicated region
    $region2: #{tpu_custom_call.1} parent=1 // pred_check
      _
    $region3: #{tpu_custom_call.1} parent=1 // pred_check_branch
      %9 = sbr.rel (0) target = $region5
    $region4: #{tpu_custom_call.1} parent=1 // pred_region
      %s11 = ssub.s32 512, 256
      %12 = vsyncadd [#allocation3], %s11
      %s13 = sshll.u32 [#allocation2], 4
      %s14 = int_to_ptr.vmem [resolvable:$true] %s13
      %19 = dma.hbm_to_vmem [thread:$0]  %s0, 256, %s14, [#allocation3], 256, 256, 16
    $region5: #{tpu_custom_call.1} parent=1 // pred_fallthru
      _
    // Predicated region
    $region6: #{tpu_custom_call.1} parent=1 // pred_check
      _
    $region7: #{tpu_custom_call.1} parent=1 // pred_check_branch
      %21 = sbr.rel (0) target = $region9
    $region8: #{tpu_custom_call.1} parent=1 // pred_region
      %22 = dma.done [#allocation3], 512
    $region9: #{tpu_custom_call.1} parent=1 // pred_fallthru
      _
    %v23 = vld [vmem:[#allocation2] sm:$0xff]
    %v24 = vld [vmem:[#allocation2 + $0x8] sm:$0xff]
    %v25 = vld [vmem:[#allocation2 + $0x10] sm:$0xff]
    %v26 = vld [vmem:[#allocation2 + $0x18] sm:$0xff]
    %v27 = vmin.f32 %v23, 20.0
    %v28 = vmin.f32 %v24, 20.0
    %v29 = vmin.f32 %v25, 20.0
    %v30 = vmin.f32 %v26, 20.0
    %v31 = vmul.f32 %v27, 1.442695
    %v32 = vpow.pop %v31
    %v33 = vmul.f32 %v28, 1.442695
    %v34 = vpow.pop %v33
    %v35 = vmul.f32 %v29, 1.442695
    %v36 = vpow.pop %v35
    %v37 = vmul.f32 %v30, 1.442695
    %v38 = vpow.pop %v37
    %v39 = vadd.f32 %v32, 2.0
    %v40 = vadd.f32 %v34, 2.0
    %v41 = vadd.f32 %v36, 2.0
    %v42 = vadd.f32 %v38, 2.0
    %v43 = vmul.f32 %v32, %v39
    %v44 = vmul.f32 %v34, %v40
    %v45 = vmul.f32 %v36, %v41
    %v46 = vmul.f32 %v38, %v42
    %v47 = vadd.f32 %v43, 2.0
    %v48 = vadd.f32 %v44, 2.0
    %v49 = vadd.f32 %v45, 2.0
    %v50 = vadd.f32 %v46, 2.0
    %v51 = vrcp.pop %v47
    %v52 = vrcp.pop %v48
    %v53 = vrcp.pop %v49
    %v54 = vrcp.pop %v50
    %v55 = vmul.f32 %v43, %v51
    %v56 = vmul.f32 %v44, %v52
    %v57 = vmul.f32 %v45, %v53
    %v58 = vmul.f32 %v46, %v54
    %vm59 = vcmp.gt.f32.partialorder %v23, 20.0
    %vm60 = vcmp.gt.f32.partialorder %v24, 20.0
    %vm61 = vcmp.gt.f32.partialorder %v25, 20.0
    %vm62 = vcmp.gt.f32.partialorder %v26, 20.0
    %v63 = vmul.f32 %v23, %v55
    %v64 = vmul.f32 %v24, %v56
    %v65 = vmul.f32 %v25, %v57
    %v66 = vmul.f32 %v26, %v58
    %v67 = vsel %vm59, %v23, %v63
    %v68 = vsel %vm60, %v24, %v64
    %v69 = vsel %vm61, %v25, %v65
    %v70 = vsel %vm62, %v26, %v66
    %71 = vst [vmem:[#allocation5] sm:$0xff] %v67
    %72 = vst [vmem:[#allocation5 + $0x8] sm:$0xff] %v68
    %73 = vst [vmem:[#allocation5 + $0x10] sm:$0xff] %v69
    %74 = vst [vmem:[#allocation5 + $0x18] sm:$0xff] %v70
    // Predicated region
    $region10: #{tpu_custom_call.1} parent=1 // pred_check
      _
    $region11: #{tpu_custom_call.1} parent=1 // pred_check_branch
      %76 = sbr.rel (0) target = $region13
    $region12: #{tpu_custom_call.1} parent=1 // pred_region
      %s78 = ssub.s32 512, 256
      %79 = vsyncadd [#allocation4], %s78
      %s80 = sshll.u32 [#allocation5], 4
      %s81 = int_to_ptr.vmem [resolvable:$true] %s80
      %86 = dma.vmem_to_hbm [thread:$0]  %s81, 256, %s1, [#allocation4], 256, 256, 16
    $region13: #{tpu_custom_call.1} parent=1 // pred_fallthru
      _
    // Predicated region
    $region14: #{tpu_custom_call.1} parent=1 // pred_check
      _
    $region15: #{tpu_custom_call.1} parent=1 // pred_check_branch
      %88 = sbr.rel (0) target = $region17
    $region16: #{tpu_custom_call.1} parent=1 // pred_region
      %89 = dma.done [#allocation4], 512
    $region17: #{tpu_custom_call.1} parent=1 // pred_fallthru
      _
    %90 = vsyncpa [#allocation3], 1
    %91 = vsyncpa [#allocation4], 1

</llo_original>
